<compile_context>
chip_gen: v7x
topology: tpu7x:2x2x1
jax: 0.10.0
libtpu: 0.0.40
codegen_flags: <defaults>
</compile_context>

<pallas_src>
import jax
import jax.numpy as jnp
from jax.experimental import pallas as pl
from jax.experimental.pallas import tpu as pltpu


# ---------------------------------------------------------------------------
# helpers
# ---------------------------------------------------------------------------

def _pick_row_tile(n):
    """Largest tile (multiple of 8) dividing n while keeping >= 2 grid steps."""
    for cand in (2048, 1024, 512, 256, 128, 64, 32, 16, 8):
        if n % cand == 0 and n // cand >= 2:
            return cand
    return n


# ---------------------------------------------------------------------------
# Kernel 1: 1x1 conv (channel matmul) + folded BN + ReLU, row-tiled over B*H*W
# ---------------------------------------------------------------------------

def _pw_conv_bn_relu_kernel(x_ref, w_ref, s_ref, b_ref, o_ref):
    x = x_ref[...]                                             # (TM, Cin)
    y = jnp.dot(x, w_ref[...], preferred_element_type=jnp.float32)
    y = y * s_ref[...] + b_ref[...]                            # (1, Cout) bcast
    o_ref[...] = jnp.maximum(y, 0.0).astype(o_ref.dtype)


def pw_conv_bn_relu(x_flat, w, scale, bias):
    n, cin = x_flat.shape
    cout = w.shape[1]
    tm = _pick_row_tile(n)
    itemsize = x_flat.dtype.itemsize
    cost = pl.CostEstimate(
        flops=2 * n * cin * cout,
        transcendentals=0,
        bytes_accessed=n * (cin + cout) * itemsize + (cin * cout + 2 * cout) * 4,
    )
    return pl.pallas_call(
        _pw_conv_bn_relu_kernel,
        out_shape=jax.ShapeDtypeStruct((n, cout), x_flat.dtype),
        grid_spec=pltpu.PrefetchScalarGridSpec(
            num_scalar_prefetch=0,
            grid=(n // tm,),
            in_specs=[
                pl.BlockSpec((tm, cin), lambda i: (i, 0)),
                pl.BlockSpec((cin, cout), lambda i: (0, 0)),
                pl.BlockSpec((1, cout), lambda i: (0, 0)),
                pl.BlockSpec((1, cout), lambda i: (0, 0)),
            ],
            out_specs=pl.BlockSpec((tm, cout), lambda i: (i, 0)),
        ),
        compiler_params=pltpu.CompilerParams(dimension_semantics=("parallel",)),
        cost_estimate=cost,
    )(x_flat, w, scale, bias)


# ---------------------------------------------------------------------------
# Kernel 2: 3x3 conv (stride 1, spatial pad done in wrapper) + BN + ReLU.
# One batch element per grid step; the conv is 9 shifted (HW, C) x (C, C)
# matmuls accumulated in f32, output written as a lane-dense (HW, C) slab.
# ---------------------------------------------------------------------------

def _conv3x3_bn_relu_kernel(xp_ref, w_ref, s_ref, b_ref, o_ref):
    _, hp, wp, c = xp_ref.shape
    h, w = hp - 2, wp - 2
    xp = xp_ref[...][0]                                        # (Hp, Wp, C)
    acc = jnp.zeros((h * w, c), jnp.float32)
    for k in range(9):
        dy, dx = k // 3, k % 3
        win = xp[dy:dy + h, dx:dx + w, :].reshape(h * w, c)
        acc = acc + jnp.dot(win, w_ref[k], preferred_element_type=jnp.float32)
    y = jnp.maximum(acc * s_ref[...] + b_ref[...], 0.0)
    o_ref[...] = y[None].astype(o_ref.dtype)


def conv3x3_bn_relu(x_padded, w9, scale, bias):
    b, hp, wp, c = x_padded.shape
    h, wd = hp - 2, wp - 2
    itemsize = x_padded.dtype.itemsize
    cost = pl.CostEstimate(
        flops=2 * b * h * wd * 9 * c * c,
        transcendentals=0,
        bytes_accessed=(b * hp * wp * c + b * h * wd * c + 9 * c * c + 2 * c) * itemsize,
    )
    return pl.pallas_call(
        _conv3x3_bn_relu_kernel,
        out_shape=jax.ShapeDtypeStruct((b, h * wd, c), x_padded.dtype),
        grid_spec=pltpu.PrefetchScalarGridSpec(
            num_scalar_prefetch=0,
            grid=(b,),
            in_specs=[
                pl.BlockSpec((1, hp, wp, c), lambda i: (i, 0, 0, 0)),
                pl.BlockSpec((9, c, c), lambda i: (0, 0, 0)),
                pl.BlockSpec((1, c), lambda i: (0, 0)),
                pl.BlockSpec((1, c), lambda i: (0, 0)),
            ],
            out_specs=pl.BlockSpec((1, h * wd, c), lambda i: (i, 0, 0)),
        ),
        compiler_params=pltpu.CompilerParams(dimension_semantics=("parallel",)),
        cost_estimate=cost,
    )(x_padded, w9, scale, bias)


# ---------------------------------------------------------------------------
# Kernel 3: 1x1 conv + BN + SE (squeeze/excite gate) + residual add + ReLU,
# fused per batch element (SE's global average pool needs the full HW block).
# ---------------------------------------------------------------------------

def _make_out_kernel(use_se):
    def kernel(h2_ref, idn_ref, w3_ref, s_ref, b_ref, wa_ref, wb_ref, o_ref):
        h2 = h2_ref[...][0]                                    # (HW, Cmid)
        y = jnp.dot(h2, w3_ref[...], preferred_element_type=jnp.float32)
        y = y * s_ref[...] + b_ref[...]                        # (HW, Cexp), f32
        if use_se:
            hw = y.shape[0]
            pooled = jnp.sum(y, axis=0, keepdims=True) * (1.0 / hw)   # (1, Cexp)
            g = jnp.maximum(
                jnp.dot(pooled, wa_ref[...].astype(jnp.float32),
                        preferred_element_type=jnp.float32), 0.0)
            gate = jax.nn.sigmoid(
                jnp.dot(g, wb_ref[...].astype(jnp.float32),
                        preferred_element_type=jnp.float32))           # (1, Cexp)
            y = y * gate
        y = y + idn_ref[...][0].astype(jnp.float32)
        o_ref[...] = jnp.maximum(y, 0.0)[None].astype(o_ref.dtype)
    return kernel


def conv3_bn_se_residual_relu(h2, identity, w3, scale, bias, se_w1, se_w2, use_se):
    b, hw, cmid = h2.shape
    cexp = w3.shape[1]
    cr = se_w1.shape[1]
    itemsize = h2.dtype.itemsize
    cost = pl.CostEstimate(
        flops=2 * b * hw * cmid * cexp + 4 * b * cexp * cr + 4 * b * hw * cexp,
        transcendentals=b * cexp,
        bytes_accessed=b * hw * (cmid + 2 * cexp) * itemsize
        + (cmid * cexp + 2 * cexp + cexp * cr + cr * cexp) * 4,
    )
    return pl.pallas_call(
        _make_out_kernel(use_se),
        out_shape=jax.ShapeDtypeStruct((b, hw, cexp), h2.dtype),
        grid_spec=pltpu.PrefetchScalarGridSpec(
            num_scalar_prefetch=0,
            grid=(b,),
            in_specs=[
                pl.BlockSpec((1, hw, cmid), lambda i: (i, 0, 0)),
                pl.BlockSpec((1, hw, cexp), lambda i: (i, 0, 0)),
                pl.BlockSpec((cmid, cexp), lambda i: (0, 0)),
                pl.BlockSpec((1, cexp), lambda i: (0, 0)),
                pl.BlockSpec((1, cexp), lambda i: (0, 0)),
                pl.BlockSpec((cexp, cr), lambda i: (0, 0)),
                pl.BlockSpec((cr, cexp), lambda i: (0, 0)),
            ],
            out_specs=pl.BlockSpec((1, hw, cexp), lambda i: (i, 0, 0)),
        ),
        compiler_params=pltpu.CompilerParams(dimension_semantics=("parallel",)),
        cost_estimate=cost,
    )(h2, identity, w3, scale, bias, se_w1, se_w2)


# ---------------------------------------------------------------------------
# Full Bottleneck forward (identity configuration: stride=1, no downsample)
# ---------------------------------------------------------------------------

def bottleneck_forward(x_nchw, params, *, use_se=True):
    # TODO(synk): stride > 1 and the optional `downsample` branch (1x1 conv +
    # BN on the identity) are not implemented; this covers the identity case
    # in_channels == out_channels * expansion, stride == 1.
    b, cin, h, w = x_nchw.shape
    cmid = params["w1"].shape[1]
    cexp = params["w3"].shape[1]
    assert cin == cexp, "identity shortcut needs in_channels == out_channels*expansion"

    # Channels-last so C sits on the lane axis (lane-dense loads/stores).
    x_nhwc = jnp.transpose(x_nchw, (0, 2, 3, 1))               # (B, H, W, Cin)

    # Stage 1: conv1 (1x1) + bn1 + relu.
    h1 = pw_conv_bn_relu(x_nhwc.reshape(b * h * w, cin),
                         params["w1"], params["s1"], params["b1"])

    # Stage 2: conv2 (3x3, stride 1, pad 1) + bn2 + relu.
    h1 = h1.reshape(b, h, w, cmid)
    h1p = jnp.pad(h1, ((0, 0), (1, 1), (1, 1), (0, 0)))
    h2 = conv3x3_bn_relu(h1p, params["w2"].reshape(9, cmid, cmid),
                         params["s2"], params["b2"])           # (B, H*W, Cmid)

    # Stage 3: conv3 (1x1) + bn3 + SE + residual + relu (fused).
    identity = x_nhwc.reshape(b, h * w, cexp)
    out = conv3_bn_se_residual_relu(h2, identity, params["w3"], params["s3"],
                                    params["b3"], params["se_w1"],
                                    params["se_w2"], use_se)   # (B, H*W, Cexp)

    return jnp.transpose(out.reshape(b, h, w, cexp), (0, 3, 1, 2))


# ---------------------------------------------------------------------------
# Pure-JAX reference mirroring the PyTorch forward (eval-mode BN)
# ---------------------------------------------------------------------------

def bottleneck_ref(x_nchw, p, use_se=True):
    hp = jax.lax.Precision.HIGHEST
    x = jnp.transpose(x_nchw, (0, 2, 3, 1))                    # NHWC
    h = jnp.einsum("nhwc,cd->nhwd", x, p["w1"], precision=hp)
    h = jnp.maximum(h * p["s1"][0] + p["b1"][0], 0.0)
    h = jax.lax.conv_general_dilated(
        h, p["w2"], window_strides=(1, 1), padding=((1, 1), (1, 1)),
        dimension_numbers=("NHWC", "HWIO", "NHWC"), precision=hp)
    h = jnp.maximum(h * p["s2"][0] + p["b2"][0], 0.0)
    y = jnp.einsum("nhwc,cd->nhwd", h, p["w3"], precision=hp)
    y = y * p["s3"][0] + p["b3"][0]
    if use_se:
        pooled = jnp.mean(y, axis=(1, 2))                      # (B, Cexp)
        g = jnp.maximum(jnp.dot(pooled, p["se_w1"], precision=hp), 0.0)
        gate = jax.nn.sigmoid(jnp.dot(g, p["se_w2"], precision=hp))
        y = y * gate[:, None, None, :]
    y = jnp.maximum(y + x, 0.0)
    return jnp.transpose(y, (0, 3, 1, 2))


# ---------------------------------------------------------------------------
# main
# ---------------------------------------------------------------------------

if __name__ == "__main__":
    B = 2
    out_channels = 16
    expansion = 4
    in_channels = out_channels * expansion   # 64 -> identity shortcut, no downsample
    H = W = 16
    reduction = 16
    cmid = out_channels
    cexp = out_channels * expansion
    cr = max(cexp // reduction, 1)
    eps = 1e-5

    key = jax.random.PRNGKey(0)
    keys = jax.random.split(key, 20)

    x = jax.random.normal(keys[0], (B, in_channels, H, W), dtype=jnp.float32)

    def bn_fold(kg, kb, km, kv, c):
        gamma = 1.0 + 0.1 * jax.random.normal(kg, (c,), jnp.float32)
        beta = 0.1 * jax.random.normal(kb, (c,), jnp.float32)
        mean = 0.1 * jax.random.normal(km, (c,), jnp.float32)
        var = 0.5 + jax.random.uniform(kv, (c,), jnp.float32)
        scale = gamma / jnp.sqrt(var + eps)
        bias = beta - mean * scale
        return scale.reshape(1, c), bias.reshape(1, c)

    w1 = jax.random.normal(keys[1], (in_channels, cmid), jnp.float32) * (1.0 / in_channels) ** 0.5
    w2 = jax.random.normal(keys[2], (3, 3, cmid, cmid), jnp.float32) * (1.0 / (9 * cmid)) ** 0.5
    w3 = jax.random.normal(keys[3], (cmid, cexp), jnp.float32) * (1.0 / cmid) ** 0.5
    se_w1 = jax.random.normal(keys[4], (cexp, cr), jnp.float32) * (1.0 / cexp) ** 0.5
    se_w2 = jax.random.normal(keys[5], (cr, cexp), jnp.float32) * (1.0 / cr) ** 0.5

    s1, b1 = bn_fold(keys[6], keys[7], keys[8], keys[9], cmid)
    s2, b2 = bn_fold(keys[10], keys[11], keys[12], keys[13], cmid)
    s3, b3 = bn_fold(keys[14], keys[15], keys[16], keys[17], cexp)

    params = dict(w1=w1, s1=s1, b1=b1, w2=w2, s2=s2, b2=b2,
                  w3=w3, s3=s3, b3=b3, se_w1=se_w1, se_w2=se_w2)

    out = bottleneck_forward(x, params, use_se=True)
    out = jax.block_until_ready(out)

    ref = bottleneck_ref(x, params, use_se=True)
    assert out.shape == (B, cexp, H, W)
    err = float(jnp.max(jnp.abs(out - ref)))
    assert jnp.allclose(out, ref, atol=2e-3, rtol=2e-3), f"max abs err {err}"

    print("KERNEL_OK")
</pallas_src>

<mosaic_0001>
module attributes {stable_mosaic.version = 11 : i64} {
  func.func @_pw_conv_bn_relu_kernel(%arg0: i32, %arg1: memref<256x64xf32, #tpu.memory_space<vmem>>, %arg2: memref<64x16xf32, #tpu.memory_space<vmem>>, %arg3: memref<1x16xf32, #tpu.memory_space<vmem>>, %arg4: memref<1x16xf32, #tpu.memory_space<vmem>>, %arg5: memref<256x16xf32, #tpu.memory_space<vmem>>) attributes {dimension_semantics = [#tpu.dimension_semantics<parallel>], iteration_bounds = array<i64: 2>, scalar_prefetch = 0 : i64, scratch_operands = 0 : i64, tpu.core_type = #tpu.core_type<tc>, window_params = [{transform_indices = @transform_0, window_bounds = array<i64: 256, 64>}, {pipeline_mode = #tpu.pipeline_mode<synchronous>, transform_indices = @transform_1, window_bounds = array<i64: 64, 16>}, {pipeline_mode = #tpu.pipeline_mode<synchronous>, transform_indices = @transform_2, window_bounds = array<i64: 1, 16>}, {pipeline_mode = #tpu.pipeline_mode<synchronous>, transform_indices = @transform_3, window_bounds = array<i64: 1, 16>}, {transform_indices = @transform_4, window_bounds = array<i64: 256, 16>}]} {
    %c0 = arith.constant 0 : index
    %c0_0 = arith.constant 0 : index
    %0 = vector.load %arg1[%c0, %c0_0] : memref<256x64xf32, #tpu.memory_space<vmem>>, vector<256x64xf32>
    %c0_1 = arith.constant 0 : index
    %c0_2 = arith.constant 0 : index
    %1 = vector.load %arg2[%c0_1, %c0_2] : memref<64x16xf32, #tpu.memory_space<vmem>>, vector<64x16xf32>
    %cst = arith.constant dense<0.000000e+00> : vector<256x16xf32>
    %2 = tpu.matmul %0, %1, %cst {dimension_numbers = #tpu.dot_dimension_numbers<[1], [0], [0], [1], [0, 0, 1, 1], [], []>} : vector<256x64xf32>, vector<64x16xf32>, vector<256x16xf32> -> vector<256x16xf32>
    %c0_3 = arith.constant 0 : index
    %c0_4 = arith.constant 0 : index
    %3 = vector.load %arg3[%c0_3, %c0_4] : memref<1x16xf32, #tpu.memory_space<vmem>>, vector<1x16xf32>
    %4 = vector.broadcast %3 : vector<1x16xf32> to vector<256x16xf32>
    %5 = arith.mulf %2, %4 : vector<256x16xf32>
    %c0_5 = arith.constant 0 : index
    %c0_6 = arith.constant 0 : index
    %6 = vector.load %arg4[%c0_5, %c0_6] : memref<1x16xf32, #tpu.memory_space<vmem>>, vector<1x16xf32>
    %7 = vector.broadcast %6 : vector<1x16xf32> to vector<256x16xf32>
    %8 = arith.addf %5, %7 : vector<256x16xf32>
    %cst_7 = arith.constant 0.000000e+00 : f32
    %9 = vector.broadcast %cst_7 : f32 to vector<256x16xf32>
    %10 = arith.maximumf %8, %9 : vector<256x16xf32>
    %c0_8 = arith.constant 0 : index
    %c0_9 = arith.constant 0 : index
    %11 = vector.load %arg5[%c0_8, %c0_9] : memref<256x16xf32, #tpu.memory_space<vmem>>, vector<256x16xf32>
    tpu.vector_store %arg5[%c0_8, %c0_9], %10 {strides = array<i32>} : memref<256x16xf32, #tpu.memory_space<vmem>>, vector<256x16xf32>,
    return
  }
  func.func @transform_0(%arg0: i32) -> (i32, i32) {
    %c0_i32 = arith.constant 0 : i32
    %c0_i32_0 = arith.constant 0 : i32
    return %arg0, %c0_i32 : i32, i32
  }
  func.func @transform_1(%arg0: i32) -> (i32, i32) {
    %c0_i32 = arith.constant 0 : i32
    %c0_i32_0 = arith.constant 0 : i32
    %c0_i32_1 = arith.constant 0 : i32
    return %c0_i32, %c0_i32_0 : i32, i32
  }
  func.func @transform_2(%arg0: i32) -> (i32, i32) {
    %c0_i32 = arith.constant 0 : i32
    %c0_i32_0 = arith.constant 0 : i32
    %c0_i32_1 = arith.constant 0 : i32
    return %c0_i32, %c0_i32_0 : i32, i32
  }
  func.func @transform_3(%arg0: i32) -> (i32, i32) {
    %c0_i32 = arith.constant 0 : i32
    %c0_i32_0 = arith.constant 0 : i32
    %c0_i32_1 = arith.constant 0 : i32
    return %c0_i32, %c0_i32_0 : i32, i32
  }
  func.func @transform_4(%arg0: i32) -> (i32, i32) {
    %c0_i32 = arith.constant 0 : i32
    %c0_i32_0 = arith.constant 0 : i32
    return %arg0, %c0_i32 : i32, i32
  }
}

</mosaic_0001>

<llo_original>
// kernel: tpu_custom_call.1
$region0: #{tpu_custom_call.1}
  #allocation0 [shape = 'u32[]', space=smem, size = 0x4, offset = 0x4, fixed_abs, tag = 'smem constant byte address 0x4 - core index']
  #allocation1 [shape = 'u32[144,128]{1,0:T(1,128)}', space=vmem, size = 0x12000, scoped, tag = 'internal scratch']
  %s0 = inlined_call_operand.vmem [shape: f32[512,64], index: 0, kind: input, shape index: {}]
  %s1 = inlined_call_operand.vmem [shape: f32[64,16], index: 1, kind: input, shape index: {}]
  %s2 = inlined_call_operand.vmem [shape: f32[1,16], index: 2, kind: input, shape index: {}]
  %s3 = inlined_call_operand.vmem [shape: f32[1,16], index: 3, kind: input, shape index: {}]
  %s4 = inlined_call_operand.vmem [shape: f32[512,16], index: 4, kind: output, shape index: {}]
  %s5 = sld [smem:[#allocation0]]
  $region49: #{tpu_custom_call.1} parent=0
    _
  %s7 = ssub.s32 1, %s5
  %s8 = scalar_select 0, %s7, %s5
  loop: start=0, step=1, limit=4
  $region2: #{tpu_custom_call.1} parent=0 // loop_pre_header
    _
  $region3: #{tpu_custom_call.1} parent=0 // loop_header
    %s10 = sphi 0, %s14
    %p11 = scmp.ge.s32.totalorder %s10, 4
    %s20 = sphi 0, %s22
    %s23 = sphi 0, %s20
    %s24 = sphi 0, %s23
    %s40 = sphi 0, %s24
    %s44 = sphi 0, %s44
    %s46 = sphi 0, %s44
    %s47 = sphi 0, %s46
    %s61 = sphi 0, %s47
    %s65 = sphi 0, %s65
    %s67 = sphi 0, %s65
    %s68 = sphi 0, %s67
    %s82 = sphi 0, %s68
    %s86 = sphi 0, %s86
    %s88 = sphi 0, %s86
    %s89 = sphi 0, %s88
    %s103 = sphi 0, %s89
    %s109 = sphi 0, %s111
    %s112 = sphi 0, %s109
    %s113 = sphi 0, %s112
    %s129 = sphi 0, %s113
  $region4: #{tpu_custom_call.1} parent=0 // loop_header_branch
    %13 = sbr.rel (%p11) target = $region8
  $region5: #{tpu_custom_call.1} parent=0 // loop_body
    %s15 = ssub.s32 %s10, 1
    %s16 = ssub.s32 %s10, 2
    %s17 = sadd.s32 %s10, 1
    %s18 = ssub.s32 %s10, %s17
    %p19 = scmp.eq.s32.totalorder %s18, 0
    %s21 = sadd.s32 %s20, 1
    %s22 = scalar_select %p19, %s20, %s21
    %p25 = pneg %p19
    %p26 = scmp.eq.s32.totalorder %s10, 1
    %p27 = por %p25, %p26
    %p28 = scmp.ne.s32.totalorder %s20, %s23
    %p29 = scmp.eq.s32.totalorder %s10, 0
    %p30 = por %p28, %p29
    %p31 = scmp.ne.s32.totalorder %s20, %s23
    %p32 = scmp.eq.s32.totalorder %s15, 1
    %p33 = por %p31, %p32
    %p34 = scmp.ne.s32.totalorder %s23, %s24
    %p35 = scmp.eq.s32.totalorder %s15, 0
    %p36 = por %p34, %p35
    %p37 = scmp.ne.s32.totalorder %s23, %s24
    %p38 = scmp.eq.s32.totalorder %s16, 1
    %p39 = por %p37, %p38
    %p41 = scmp.ne.s32.totalorder %s24, %s40
    %p42 = scmp.eq.s32.totalorder %s16, 0
    %p43 = por %p41, %p42
    %s45 = sadd.s32 %s44, 1
    %p48 = scmp.eq.s32.totalorder %s10, 1
    %p49 = scmp.ne.s32.totalorder %s44, %s46
    %p50 = scmp.eq.s32.totalorder %s10, 0
    %p51 = por %p49, %p50
    %p52 = scmp.ne.s32.totalorder %s44, %s46
    %p53 = scmp.eq.s32.totalorder %s15, 1
    %p54 = por %p52, %p53
    %p55 = scmp.ne.s32.totalorder %s46, %s47
    %p56 = scmp.eq.s32.totalorder %s15, 0
    %p57 = por %p55, %p56
    %p58 = scmp.ne.s32.totalorder %s46, %s47
    %p59 = scmp.eq.s32.totalorder %s16, 1
    %p60 = por %p58, %p59
    %p62 = scmp.ne.s32.totalorder %s47, %s61
    %p63 = scmp.eq.s32.totalorder %s16, 0
    %p64 = por %p62, %p63
    %s66 = sadd.s32 %s65, 1
    %p69 = scmp.eq.s32.totalorder %s10, 1
    %p70 = scmp.ne.s32.totalorder %s65, %s67
    %p71 = scmp.eq.s32.totalorder %s10, 0
    %p72 = por %p70, %p71
    %p73 = scmp.ne.s32.totalorder %s65, %s67
    %p74 = scmp.eq.s32.totalorder %s15, 1
    %p75 = por %p73, %p74
    %p76 = scmp.ne.s32.totalorder %s67, %s68
    %p77 = scmp.eq.s32.totalorder %s15, 0
    %p78 = por %p76, %p77
    %p79 = scmp.ne.s32.totalorder %s67, %s68
    %p80 = scmp.eq.s32.totalorder %s16, 1
    %p81 = por %p79, %p80
    %p83 = scmp.ne.s32.totalorder %s68, %s82
    %p84 = scmp.eq.s32.totalorder %s16, 0
    %p85 = por %p83, %p84
    %s87 = sadd.s32 %s86, 1
    %p90 = scmp.eq.s32.totalorder %s10, 1
    %p91 = scmp.ne.s32.totalorder %s86, %s88
    %p92 = scmp.eq.s32.totalorder %s10, 0
    %p93 = por %p91, %p92
    %p94 = scmp.ne.s32.totalorder %s86, %s88
    %p95 = scmp.eq.s32.totalorder %s15, 1
    %p96 = por %p94, %p95
    %p97 = scmp.ne.s32.totalorder %s88, %s89
    %p98 = scmp.eq.s32.totalorder %s15, 0
    %p99 = por %p97, %p98
    %p100 = scmp.ne.s32.totalorder %s88, %s89
    %p101 = scmp.eq.s32.totalorder %s16, 1
    %p102 = por %p100, %p101
    %p104 = scmp.ne.s32.totalorder %s89, %s103
    %p105 = scmp.eq.s32.totalorder %s16, 0
    %p106 = por %p104, %p105
    %s107 = ssub.s32 %s10, %s17
    %p108 = scmp.eq.s32.totalorder %s107, 0
    %s110 = sadd.s32 %s109, 1
    %s111 = scalar_select %p108, %s109, %s110
    %p114 = pneg %p108
    %p115 = scmp.eq.s32.totalorder %s10, 1
    %p116 = por %p114, %p115
    %p117 = scmp.ne.s32.totalorder %s109, %s112
    %p118 = scmp.eq.s32.totalorder %s10, 0
    %p119 = por %p117, %p118
    %p120 = scmp.ne.s32.totalorder %s109, %s112
    %p121 = scmp.eq.s32.totalorder %s15, 1
    %p122 = por %p120, %p121
    %p123 = scmp.ne.s32.totalorder %s112, %s113
    %p124 = scmp.eq.s32.totalorder %s15, 0
    %p125 = por %p123, %p124
    %p126 = scmp.ne.s32.totalorder %s112, %s113
    %p127 = scmp.eq.s32.totalorder %s16, 1
    %p128 = por %p126, %p127
    %p130 = scmp.ne.s32.totalorder %s113, %s129
    %p131 = scmp.eq.s32.totalorder %s16, 0
    %p132 = por %p130, %p131
    %p133 = scmp.le.s32.totalorder 1, %s10
    %p134 = scmp.lt.s32.totalorder %s10, 3
    %p135 = pnand %p133, %p134
    %p136 = pneg %p135
    // Predicated region
    $region9: #{tpu_custom_call.1} parent=5 // pred_check
      _
    $region10: #{tpu_custom_call.1} parent=5 // pred_check_branch
      %138 = sbr.rel (%p135) target = $region12
    $region11: #{tpu_custom_call.1} parent=5 // pred_region
      %s139 = ssub.s32 %s10, 1
      // Predicated region
      $region13: #{tpu_custom_call.1} parent=11 // pred_check
        %p140 = pneg %p57
      $region14: #{tpu_custom_call.1} parent=11 // pred_check_branch
        %142 = sbr.rel (%p140) target = $region16
      $region15: #{tpu_custom_call.1} parent=11 // pred_region
        _
      $region16: #{tpu_custom_call.1} parent=11 // pred_fallthru
        _
      // Predicated region
      $region17: #{tpu_custom_call.1} parent=11 // pred_check
        %p143 = pneg %p78
      $region18: #{tpu_custom_call.1} parent=11 // pred_check_branch
        %145 = sbr.rel (%p143) target = $region20
      $region19: #{tpu_custom_call.1} parent=11 // pred_region
        _
      $region20: #{tpu_custom_call.1} parent=11 // pred_fallthru
        _
      // Predicated region
      $region21: #{tpu_custom_call.1} parent=11 // pred_check
        %p146 = pneg %p99
      $region22: #{tpu_custom_call.1} parent=11 // pred_check_branch
        %148 = sbr.rel (%p146) target = $region24
      $region23: #{tpu_custom_call.1} parent=11 // pred_region
        _
      $region24: #{tpu_custom_call.1} parent=11 // pred_fallthru
        _
    $region12: #{tpu_custom_call.1} parent=5 // pred_fallthru
      _
    %p149 = scmp.lt.s32.totalorder %s10, 2
    // Predicated region
    $region25: #{tpu_custom_call.1} parent=5 // pred_check
      %p150 = pneg %p149
    $region26: #{tpu_custom_call.1} parent=5 // pred_check_branch
      %152 = sbr.rel (%p150) target = $region28
    $region27: #{tpu_custom_call.1} parent=5 // pred_region
      // Predicated region
      $region29: #{tpu_custom_call.1} parent=27 // pred_check
        %p153 = pneg %p30
      $region30: #{tpu_custom_call.1} parent=27 // pred_check_branch
        %155 = sbr.rel (%p153) target = $region32
      $region31: #{tpu_custom_call.1} parent=27 // pred_region
        %s156 = smul.u32 32, %s10
        %p157 = scmp.lt.s32.totalorder %s156, 63
        %s158 = scalar_select %p157, %s156, 63
        %s159 = smul.addr %s158, 8
        %s160 = scalar_lea.vmem %s0, %s159
        %s161 = smul.u32 32, %s10
      $region32: #{tpu_custom_call.1} parent=27 // pred_fallthru
        _
    $region28: #{tpu_custom_call.1} parent=5 // pred_fallthru
      _
    %p162 = scmp.le.s32.totalorder 1, %s10
    %p163 = scmp.lt.s32.totalorder %s10, 3
    %p164 = pnand %p162, %p163
    %p165 = pneg %p164
    // Predicated region
    $region33: #{tpu_custom_call.1} parent=5 // pred_check
      _
    $region34: #{tpu_custom_call.1} parent=5 // pred_check_branch
      %167 = sbr.rel (%p164) target = $region36
    $region35: #{tpu_custom_call.1} parent=5 // pred_region
      %s168 = ssub.s32 %s10, 1
      %s169 = smul.u32 32, %s15
      %p170 = scmp.lt.s32.totalorder %s169, 63
      %s171 = scalar_select %p170, %s169, 63
      %s172 = smul.addr %s171, 8
      %s173 = scalar_lea.vmem %s0, %s172
      %p174 = pneg %p36
      %p175 = pneg %p33
      %p176 = pneg %p57
      %p177 = pneg %p54
      %p178 = pneg %p78
      %p179 = pneg %p75
      %p180 = pneg %p99
      %p181 = pneg %p96
      %p182 = pneg %p125
      %p183 = pneg %p122
      %s184 = smul.u32 32, %s15
      %p185 = scmp.lt.s32.totalorder %s184, 63
      %s186 = scalar_select %p185, %s184, 63
      %s187 = smul.addr %s186, 8
      %s188 = scalar_lea.vmem %s4, %s187
      %s189 = smul.u32 32, %s15
      %p190 = scmp.lt.s32.totalorder %s189, 63
      %s191 = scalar_select %p190, %s189, 63
      %s192 = smul.addr %s191, 8
      %s193 = scalar_lea.vmem %s0, %s192
      %s194 = smul.u32 32, %s15
      %s195 = smul.u32 32, %s15
      %p196 = scmp.lt.s32.totalorder %s195, 63
      %s197 = scalar_select %p196, %s195, 63
      %s198 = smul.addr %s197, 8
      %s199 = scalar_lea.vmem %s4, %s198
      %s200 = smul.u32 32, %s15
      %v201 = vld [vmem:[%s193] sm:$0xff]
      %v202 = vld [vmem:[%s193 + $0x8] sm:$0xff]
      %v203 = vld [vmem:[%s193 + $0x10] sm:$0xff]
      %v204 = vld [vmem:[%s193 + $0x18] sm:$0xff]
      %v205 = vld [vmem:[%s193 + $0x20] sm:$0xff]
      %v206 = vld [vmem:[%s193 + $0x28] sm:$0xff]
      %v207 = vld [vmem:[%s193 + $0x30] sm:$0xff]
      %v208 = vld [vmem:[%s193 + $0x38] sm:$0xff]
      %v209 = vld [vmem:[%s193 + $0x40] sm:$0xff]
      %v210 = vld [vmem:[%s193 + $0x48] sm:$0xff]
      %v211 = vld [vmem:[%s193 + $0x50] sm:$0xff]
      %v212 = vld [vmem:[%s193 + $0x58] sm:$0xff]
      %v213 = vld [vmem:[%s193 + $0x60] sm:$0xff]
      %v214 = vld [vmem:[%s193 + $0x68] sm:$0xff]
      %v215 = vld [vmem:[%s193 + $0x70] sm:$0xff]
      %v216 = vld [vmem:[%s193 + $0x78] sm:$0xff]
      %v217 = vld [vmem:[%s193 + $0x80] sm:$0xff]
      %v218 = vld [vmem:[%s193 + $0x88] sm:$0xff]
      %v219 = vld [vmem:[%s193 + $0x90] sm:$0xff]
      %v220 = vld [vmem:[%s193 + $0x98] sm:$0xff]
      %v221 = vld [vmem:[%s193 + $0xa0] sm:$0xff]
      %v222 = vld [vmem:[%s193 + $0xa8] sm:$0xff]
      %v223 = vld [vmem:[%s193 + $0xb0] sm:$0xff]
      %v224 = vld [vmem:[%s193 + $0xb8] sm:$0xff]
      %v225 = vld [vmem:[%s193 + $0xc0] sm:$0xff]
      %v226 = vld [vmem:[%s193 + $0xc8] sm:$0xff]
      %v227 = vld [vmem:[%s193 + $0xd0] sm:$0xff]
      %v228 = vld [vmem:[%s193 + $0xd8] sm:$0xff]
      %v229 = vld [vmem:[%s193 + $0xe0] sm:$0xff]
      %v230 = vld [vmem:[%s193 + $0xe8] sm:$0xff]
      %v231 = vld [vmem:[%s193 + $0xf0] sm:$0xff]
      %v232 = vld [vmem:[%s193 + $0xf8] sm:$0xff]
      %v233 = vld [vmem:[%s1] sm:$0xff]
      %v234 = vld [vmem:[%s1 + $0x8] sm:$0xff]
      %v235 = vld [vmem:[%s1 + $0x10] sm:$0xff]
      %v236 = vld [vmem:[%s1 + $0x18] sm:$0xff]
      %v237 = vld [vmem:[%s1 + $0x20] sm:$0xff]
      %v238 = vld [vmem:[%s1 + $0x28] sm:$0xff]
      %v239 = vld [vmem:[%s1 + $0x30] sm:$0xff]
      %v240 = vld [vmem:[%s1 + $0x38] sm:$0xff]
      %vm241 = vcmask 523264
      %v243 = vsel %vm241, %v201, 0
      %v246 = vsel %vm241, %v202, 0
      %v249 = vsel %vm241, %v203, 0
      %v252 = vsel %vm241, %v204, 0
      %v255 = vsel %vm241, %v205, 0
      %v258 = vsel %vm241, %v206, 0
      %v261 = vsel %vm241, %v207, 0
      %v264 = vsel %vm241, %v208, 0
      %v267 = vsel %vm241, %v209, 0
      %v270 = vsel %vm241, %v210, 0
      %v273 = vsel %vm241, %v211, 0
      %v276 = vsel %vm241, %v212, 0
      %v279 = vsel %vm241, %v213, 0
      %v282 = vsel %vm241, %v214, 0
      %v285 = vsel %vm241, %v215, 0
      %v288 = vsel %vm241, %v216, 0
      %v291 = vsel %vm241, %v217, 0
      %v294 = vsel %vm241, %v218, 0
      %v297 = vsel %vm241, %v219, 0
      %v300 = vsel %vm241, %v220, 0
      %v303 = vsel %vm241, %v221, 0
      %v306 = vsel %vm241, %v222, 0
      %v309 = vsel %vm241, %v223, 0
      %v312 = vsel %vm241, %v224, 0
      %v315 = vsel %vm241, %v225, 0
      %v318 = vsel %vm241, %v226, 0
      %v321 = vsel %vm241, %v227, 0
      %v324 = vsel %vm241, %v228, 0
      %v327 = vsel %vm241, %v229, 0
      %v330 = vsel %vm241, %v230, 0
      %v333 = vsel %vm241, %v231, 0
      %v336 = vsel %vm241, %v232, 0
      %338 = vmatprep.subr.mxu0 0.0
      %339 = vmatpush1.msra.mxu0 %v233
      %340 = vmatprep.subr.mxu0 0.0
      %341 = vmatpush1.msra.mxu0 %v234
      %342 = vmatprep.subr.mxu0 0.0
      %343 = vmatpush1.msra.mxu0 %v235
      %344 = vmatprep.subr.mxu0 0.0
      %345 = vmatpush1.msra.mxu0 %v236
      %346 = vmatprep.subr.mxu0 0.0
      %347 = vmatpush1.msra.mxu0 %v237
      %348 = vmatprep.subr.mxu0 0.0
      %349 = vmatpush1.msra.mxu0 %v238
      %350 = vmatprep.subr.mxu0 0.0
      %351 = vmatpush1.msra.mxu0 %v239
      %352 = vmatprep.subr.mxu0 0.0
      %353 = vmatpush1.msra.mxu0 %v240
      %354 = vmatprep.subr.mxu0 0.0
      %355 = vmatpush1.msra.mxu0 0.0
      %356 = vmatprep.subr.mxu0 0.0
      %357 = vmatpush1.msra.mxu0 0.0
      %358 = vmatprep.subr.mxu0 0.0
      %359 = vmatpush1.msra.mxu0 0.0
      %360 = vmatprep.subr.mxu0 0.0
      %361 = vmatpush1.msra.mxu0 0.0
      %362 = vmatprep.subr.mxu0 0.0
      %363 = vmatpush1.msra.mxu0 0.0
      %364 = vmatprep.subr.mxu0 0.0
      %365 = vmatpush1.msra.mxu0 0.0
      %366 = vmatprep.subr.mxu0 0.0
      %367 = vmatpush1.msra.mxu0 0.0
      %368 = vmatprep.subr.mxu0 0.0
      %369 = vmatpush1.msra.mxu0 0.0
      %370 = vmatprep.subr.mxu0 0.0
      %371 = vmatpush1.msra.mxu0 0.0
      %372 = vmatprep.subr.mxu0 0.0
      %373 = vmatpush1.msra.mxu0 0.0
      %374 = vmatprep.subr.mxu0 0.0
      %375 = vmatpush1.msra.mxu0 0.0
      %376 = vmatprep.subr.mxu0 0.0
      %377 = vmatpush1.msra.mxu0 0.0
      %378 = vmatprep.subr.mxu0 0.0
      %379 = vmatpush1.msra.mxu0 0.0
      %380 = vmatprep.subr.mxu0 0.0
      %381 = vmatpush1.msra.mxu0 0.0
      %382 = vmatprep.subr.mxu0 0.0
      %383 = vmatpush1.msra.mxu0 0.0
      %384 = vmatprep.subr.mxu0 0.0
      %385 = vmatpush1.msra.mxu0 0.0
      %386 = vmatprep.subr.mxu0 0.0
      %387 = vmatpush1.msra.mxu0 0.0
      %388 = vmatprep.subr.mxu0 0.0
      %389 = vmatpush1.msra.mxu0 0.0
      %390 = vmatprep.subr.mxu0 0.0
      %391 = vmatpush1.msra.mxu0 0.0
      %392 = vmatprep.subr.mxu0 0.0
      %393 = vmatpush1.msra.mxu0 0.0
      %394 = vmatprep.subr.mxu0 0.0
      %395 = vmatpush1.msra.mxu0 0.0
      %396 = vmatprep.subr.mxu0 0.0
      %397 = vmatpush1.msra.mxu0 0.0
      %398 = vmatprep.subr.mxu0 0.0
      %399 = vmatpush1.msra.mxu0 0.0
      %400 = vmatprep.subr.mxu0 0.0
      %401 = vmatpush1.msra.mxu0 0.0
      %402 = vmatprep.mubr.f32.mxu0 0.0
      %403 = vmatmul.mubr.f32.gmra.mrb[0].mxu0 %v243
      %v404 = vpop.f32.mrb[0].mxu0
      %v405 = vadd.f32 0.0, %v404
      %v406 = vpop.f32.mrb[0].mxu0
      %407 = vmatprep.mubr.f32.mxu0 0.0
      %408 = vmatmul.mubr.f32.gmra.mrb[0].mxu0 %v246
      %v409 = vpop.f32.mrb[0].mxu0
      %v410 = vadd.f32 0.0, %v409
      %v411 = vpop.f32.mrb[0].mxu0
      %412 = vmatprep.mubr.f32.mxu0 0.0
      %413 = vmatmul.mubr.f32.gmra.mrb[0].mxu0 %v249
      %v414 = vpop.f32.mrb[0].mxu0
      %v415 = vadd.f32 0.0, %v414
      %v416 = vpop.f32.mrb[0].mxu0
      %417 = vmatprep.mubr.f32.mxu0 0.0
      %418 = vmatmul.mubr.f32.gmra.mrb[0].mxu0 %v252
      %v419 = vpop.f32.mrb[0].mxu0
      %v420 = vadd.f32 0.0, %v419
      %v421 = vpop.f32.mrb[0].mxu0
      %422 = vmatprep.mubr.f32.mxu0 0.0
      %423 = vmatmul.mubr.f32.gmra.mrb[0].mxu0 %v255
      %v424 = vpop.f32.mrb[0].mxu0
      %v425 = vadd.f32 0.0, %v424
      %v426 = vpop.f32.mrb[0].mxu0
      %427 = vmatprep.mubr.f32.mxu0 0.0
      %428 = vmatmul.mubr.f32.gmra.mrb[0].mxu0 %v258
      %v429 = vpop.f32.mrb[0].mxu0
      %v430 = vadd.f32 0.0, %v429
      %v431 = vpop.f32.mrb[0].mxu0
      %432 = vmatprep.mubr.f32.mxu0 0.0
      %433 = vmatmul.mubr.f32.gmra.mrb[0].mxu0 %v261
      %v434 = vpop.f32.mrb[0].mxu0
      %v435 = vadd.f32 0.0, %v434
      %v436 = vpop.f32.mrb[0].mxu0
      %437 = vmatprep.mubr.f32.mxu0 0.0
      %438 = vmatmul.mubr.f32.gmra.mrb[0].mxu0 %v264
      %v439 = vpop.f32.mrb[0].mxu0
      %v440 = vadd.f32 0.0, %v439
      %v441 = vpop.f32.mrb[0].mxu0
      %442 = vmatprep.mubr.f32.mxu0 0.0
      %443 = vmatmul.mubr.f32.gmra.mrb[0].mxu0 %v267
      %v444 = vpop.f32.mrb[0].mxu0
      %v445 = vadd.f32 0.0, %v444
      %v446 = vpop.f32.mrb[0].mxu0
      %447 = vmatprep.mubr.f32.mxu0 0.0
      %448 = vmatmul.mubr.f32.gmra.mrb[0].mxu0 %v270
      %v449 = vpop.f32.mrb[0].mxu0
      %v450 = vadd.f32 0.0, %v449
      %v451 = vpop.f32.mrb[0].mxu0
      %452 = vmatprep.mubr.f32.mxu0 0.0
      %453 = vmatmul.mubr.f32.gmra.mrb[0].mxu0 %v273
      %v454 = vpop.f32.mrb[0].mxu0
      %v455 = vadd.f32 0.0, %v454
      %v456 = vpop.f32.mrb[0].mxu0
      %457 = vmatprep.mubr.f32.mxu0 0.0
      %458 = vmatmul.mubr.f32.gmra.mrb[0].mxu0 %v276
      %v459 = vpop.f32.mrb[0].mxu0
      %v460 = vadd.f32 0.0, %v459
      %v461 = vpop.f32.mrb[0].mxu0
      %462 = vmatprep.mubr.f32.mxu0 0.0
      %463 = vmatmul.mubr.f32.gmra.mrb[0].mxu0 %v279
      %v464 = vpop.f32.mrb[0].mxu0
      %v465 = vadd.f32 0.0, %v464
      %v466 = vpop.f32.mrb[0].mxu0
      %467 = vmatprep.mubr.f32.mxu0 0.0
      %468 = vmatmul.mubr.f32.gmra.mrb[0].mxu0 %v282
      %v469 = vpop.f32.mrb[0].mxu0
      %v470 = vadd.f32 0.0, %v469
      %v471 = vpop.f32.mrb[0].mxu0
      %472 = vmatprep.mubr.f32.mxu0 0.0
      %473 = vmatmul.mubr.f32.gmra.mrb[0].mxu0 %v285
      %v474 = vpop.f32.mrb[0].mxu0
      %v475 = vadd.f32 0.0, %v474
      %v476 = vpop.f32.mrb[0].mxu0
      %477 = vmatprep.mubr.f32.mxu0 0.0
      %478 = vmatmul.mubr.f32.gmra.mrb[0].mxu0 %v288
      %v479 = vpop.f32.mrb[0].mxu0
      %v480 = vadd.f32 0.0, %v479
      %v481 = vpop.f32.mrb[0].mxu0
      %482 = vmatprep.mubr.f32.mxu0 0.0
      %483 = vmatmul.mubr.f32.gmra.mrb[0].mxu0 %v291
      %v484 = vpop.f32.mrb[0].mxu0
      %v485 = vadd.f32 0.0, %v484
      %v486 = vpop.f32.mrb[0].mxu0
      %487 = vmatprep.mubr.f32.mxu0 0.0
      %488 = vmatmul.mubr.f32.gmra.mrb[0].mxu0 %v294
      %v489 = vpop.f32.mrb[0].mxu0
      %v490 = vadd.f32 0.0, %v489
      %v491 = vpop.f32.mrb[0].mxu0
      %492 = vmatprep.mubr.f32.mxu0 0.0
      %493 = vmatmul.mubr.f32.gmra.mrb[0].mxu0 %v297
      %v494 = vpop.f32.mrb[0].mxu0
      %v495 = vadd.f32 0.0, %v494
      %v496 = vpop.f32.mrb[0].mxu0
      %497 = vmatprep.mubr.f32.mxu0 0.0
      %498 = vmatmul.mubr.f32.gmra.mrb[0].mxu0 %v300
      %v499 = vpop.f32.mrb[0].mxu0
      %v500 = vadd.f32 0.0, %v499
      %v501 = vpop.f32.mrb[0].mxu0
      %502 = vmatprep.mubr.f32.mxu0 0.0
      %503 = vmatmul.mubr.f32.gmra.mrb[0].mxu0 %v303
      %v504 = vpop.f32.mrb[0].mxu0
      %v505 = vadd.f32 0.0, %v504
      %v506 = vpop.f32.mrb[0].mxu0
      %507 = vmatprep.mubr.f32.mxu0 0.0
      %508 = vmatmul.mubr.f32.gmra.mrb[0].mxu0 %v306
      %v509 = vpop.f32.mrb[0].mxu0
      %v510 = vadd.f32 0.0, %v509
      %v511 = vpop.f32.mrb[0].mxu0
      %512 = vmatprep.mubr.f32.mxu0 0.0
      %513 = vmatmul.mubr.f32.gmra.mrb[0].mxu0 %v309
      %v514 = vpop.f32.mrb[0].mxu0
      %v515 = vadd.f32 0.0, %v514
      %v516 = vpop.f32.mrb[0].mxu0
      %517 = vmatprep.mubr.f32.mxu0 0.0
      %518 = vmatmul.mubr.f32.gmra.mrb[0].mxu0 %v312
      %v519 = vpop.f32.mrb[0].mxu0
      %v520 = vadd.f32 0.0, %v519
      %v521 = vpop.f32.mrb[0].mxu0
      %522 = vmatprep.mubr.f32.mxu0 0.0
      %523 = vmatmul.mubr.f32.gmra.mrb[0].mxu0 %v315
      %v524 = vpop.f32.mrb[0].mxu0
      %v525 = vadd.f32 0.0, %v524
      %v526 = vpop.f32.mrb[0].mxu0
      %527 = vmatprep.mubr.f32.mxu0 0.0
      %528 = vmatmul.mubr.f32.gmra.mrb[0].mxu0 %v318
      %v529 = vpop.f32.mrb[0].mxu0
      %v530 = vadd.f32 0.0, %v529
      %v531 = vpop.f32.mrb[0].mxu0
      %532 = vmatprep.mubr.f32.mxu0 0.0
      %533 = vmatmul.mubr.f32.gmra.mrb[0].mxu0 %v321
      %v534 = vpop.f32.mrb[0].mxu0
      %v535 = vadd.f32 0.0, %v534
      %v536 = vpop.f32.mrb[0].mxu0
      %537 = vmatprep.mubr.f32.mxu0 0.0
      %538 = vmatmul.mubr.f32.gmra.mrb[0].mxu0 %v324
      %v539 = vpop.f32.mrb[0].mxu0
      %v540 = vadd.f32 0.0, %v539
      %v541 = vpop.f32.mrb[0].mxu0
      %542 = vmatprep.mubr.f32.mxu0 0.0
      %543 = vmatmul.mubr.f32.gmra.mrb[0].mxu0 %v327
      %v544 = vpop.f32.mrb[0].mxu0
      %v545 = vadd.f32 0.0, %v544
      %v546 = vpop.f32.mrb[0].mxu0
      %547 = vmatprep.mubr.f32.mxu0 0.0
      %548 = vmatmul.mubr.f32.gmra.mrb[0].mxu0 %v330
      %v549 = vpop.f32.mrb[0].mxu0
      %v550 = vadd.f32 0.0, %v549
      %v551 = vpop.f32.mrb[0].mxu0
      %552 = vmatprep.mubr.f32.mxu0 0.0
      %553 = vmatmul.mubr.f32.gmra.mrb[0].mxu0 %v333
      %v554 = vpop.f32.mrb[0].mxu0
      %v555 = vadd.f32 0.0, %v554
      %v556 = vpop.f32.mrb[0].mxu0
      %557 = vmatprep.mubr.f32.mxu0 0.0
      %558 = vmatmul.mubr.f32.gmra.mrb[0].mxu0 %v336
      %v559 = vpop.f32.mrb[0].mxu0
      %v560 = vadd.f32 0.0, %v559
      %v561 = vpop.f32.mrb[0].mxu0
      %562 = vdwg.mxu0
      %v563 = vld [vmem:[%s2] sm:$0x1]
      %v565 = vlaneseq
      %v566 = vshrl.u32 %v565, 7
      %v567 = vsub.s32 0, %v566
      %v568 = vrot.slane %v563, %v567
      %v570 = vmul.f32 %v405, %v568
      %v571 = vmul.f32 %v410, %v568
      %v572 = vmul.f32 %v415, %v568
      %v573 = vmul.f32 %v420, %v568
      %v574 = vmul.f32 %v425, %v568
      %v575 = vmul.f32 %v430, %v568
      %v576 = vmul.f32 %v435, %v568
      %v577 = vmul.f32 %v440, %v568
      %v578 = vmul.f32 %v445, %v568
      %v579 = vmul.f32 %v450, %v568
      %v580 = vmul.f32 %v455, %v568
      %v581 = vmul.f32 %v460, %v568
      %v582 = vmul.f32 %v465, %v568
      %v583 = vmul.f32 %v470, %v568
      %v584 = vmul.f32 %v475, %v568
      %v585 = vmul.f32 %v480, %v568
      %v586 = vmul.f32 %v485, %v568
      %v587 = vmul.f32 %v490, %v568
      %v588 = vmul.f32 %v495, %v568
      %v589 = vmul.f32 %v500, %v568
      %v590 = vmul.f32 %v505, %v568
      %v591 = vmul.f32 %v510, %v568
      %v592 = vmul.f32 %v515, %v568
      %v593 = vmul.f32 %v520, %v568
      %v594 = vmul.f32 %v525, %v568
      %v595 = vmul.f32 %v530, %v568
      %v596 = vmul.f32 %v535, %v568
      %v597 = vmul.f32 %v540, %v568
      %v598 = vmul.f32 %v545, %v568
      %v599 = vmul.f32 %v550, %v568
      %v600 = vmul.f32 %v555, %v568
      %v601 = vmul.f32 %v560, %v568
      %v602 = vld [vmem:[%s3] sm:$0x1]
      %v604 = vlaneseq
      %v605 = vshrl.u32 %v604, 7
      %v606 = vsub.s32 0, %v605
      %v607 = vrot.slane %v602, %v606
      %v609 = vadd.f32 %v570, %v607
      %v610 = vadd.f32 %v571, %v607
      %v611 = vadd.f32 %v572, %v607
      %v612 = vadd.f32 %v573, %v607
      %v613 = vadd.f32 %v574, %v607
      %v614 = vadd.f32 %v575, %v607
      %v615 = vadd.f32 %v576, %v607
      %v616 = vadd.f32 %v577, %v607
      %v617 = vadd.f32 %v578, %v607
      %v618 = vadd.f32 %v579, %v607
      %v619 = vadd.f32 %v580, %v607
      %v620 = vadd.f32 %v581, %v607
      %v621 = vadd.f32 %v582, %v607
      %v622 = vadd.f32 %v583, %v607
      %v623 = vadd.f32 %v584, %v607
      %v624 = vadd.f32 %v585, %v607
      %v625 = vadd.f32 %v586, %v607
      %v626 = vadd.f32 %v587, %v607
      %v627 = vadd.f32 %v588, %v607
      %v628 = vadd.f32 %v589, %v607
      %v629 = vadd.f32 %v590, %v607
      %v630 = vadd.f32 %v591, %v607
      %v631 = vadd.f32 %v592, %v607
      %v632 = vadd.f32 %v593, %v607
      %v633 = vadd.f32 %v594, %v607
      %v634 = vadd.f32 %v595, %v607
      %v635 = vadd.f32 %v596, %v607
      %v636 = vadd.f32 %v597, %v607
      %v637 = vadd.f32 %v598, %v607
      %v638 = vadd.f32 %v599, %v607
      %v639 = vadd.f32 %v600, %v607
      %v640 = vadd.f32 %v601, %v607
      %v641 = vmax.f32 %v609, 0.0
      %v642 = vmax.f32 %v610, 0.0
      %v643 = vmax.f32 %v611, 0.0
      %v644 = vmax.f32 %v612, 0.0
      %v645 = vmax.f32 %v613, 0.0
      %v646 = vmax.f32 %v614, 0.0
      %v647 = vmax.f32 %v615, 0.0
      %v648 = vmax.f32 %v616, 0.0
      %v649 = vmax.f32 %v617, 0.0
      %v650 = vmax.f32 %v618, 0.0
      %v651 = vmax.f32 %v619, 0.0
      %v652 = vmax.f32 %v620, 0.0
      %v653 = vmax.f32 %v621, 0.0
      %v654 = vmax.f32 %v622, 0.0
      %v655 = vmax.f32 %v623, 0.0
      %v656 = vmax.f32 %v624, 0.0
      %v657 = vmax.f32 %v625, 0.0
      %v658 = vmax.f32 %v626, 0.0
      %v659 = vmax.f32 %v627, 0.0
      %v660 = vmax.f32 %v628, 0.0
      %v661 = vmax.f32 %v629, 0.0
      %v662 = vmax.f32 %v630, 0.0
      %v663 = vmax.f32 %v631, 0.0
      %v664 = vmax.f32 %v632, 0.0
      %v665 = vmax.f32 %v633, 0.0
      %v666 = vmax.f32 %v634, 0.0
      %v667 = vmax.f32 %v635, 0.0
      %v668 = vmax.f32 %v636, 0.0
      %v669 = vmax.f32 %v637, 0.0
      %v670 = vmax.f32 %v638, 0.0
      %v671 = vmax.f32 %v639, 0.0
      %v672 = vmax.f32 %v640, 0.0
      %vm673 = vcmask 130048
      %674 = vst.msk [vmem:[%s199] sm:$0xff] %vm673, %v641
      %675 = vst.msk [vmem:[%s199 + $0x8] sm:$0xff] %vm673, %v642
      %676 = vst.msk [vmem:[%s199 + $0x10] sm:$0xff] %vm673, %v643
      %677 = vst.msk [vmem:[%s199 + $0x18] sm:$0xff] %vm673, %v644
      %678 = vst.msk [vmem:[%s199 + $0x20] sm:$0xff] %vm673, %v645
      %679 = vst.msk [vmem:[%s199 + $0x28] sm:$0xff] %vm673, %v646
      %680 = vst.msk [vmem:[%s199 + $0x30] sm:$0xff] %vm673, %v647
      %681 = vst.msk [vmem:[%s199 + $0x38] sm:$0xff] %vm673, %v648
      %682 = vst.msk [vmem:[%s199 + $0x40] sm:$0xff] %vm673, %v649
      %683 = vst.msk [vmem:[%s199 + $0x48] sm:$0xff] %vm673, %v650
      %684 = vst.msk [vmem:[%s199 + $0x50] sm:$0xff] %vm673, %v651
      %685 = vst.msk [vmem:[%s199 + $0x58] sm:$0xff] %vm673, %v652
      %686 = vst.msk [vmem:[%s199 + $0x60] sm:$0xff] %vm673, %v653
      %687 = vst.msk [vmem:[%s199 + $0x68] sm:$0xff] %vm673, %v654
      %688 = vst.msk [vmem:[%s199 + $0x70] sm:$0xff] %vm673, %v655
      %689 = vst.msk [vmem:[%s199 + $0x78] sm:$0xff] %vm673, %v656
      %690 = vst.msk [vmem:[%s199 + $0x80] sm:$0xff] %vm673, %v657
      %691 = vst.msk [vmem:[%s199 + $0x88] sm:$0xff] %vm673, %v658
      %692 = vst.msk [vmem:[%s199 + $0x90] sm:$0xff] %vm673, %v659
      %693 = vst.msk [vmem:[%s199 + $0x98] sm:$0xff] %vm673, %v660
      %694 = vst.msk [vmem:[%s199 + $0xa0] sm:$0xff] %vm673, %v661
      %695 = vst.msk [vmem:[%s199 + $0xa8] sm:$0xff] %vm673, %v662
      %696 = vst.msk [vmem:[%s199 + $0xb0] sm:$0xff] %vm673, %v663
      %697 = vst.msk [vmem:[%s199 + $0xb8] sm:$0xff] %vm673, %v664
      %698 = vst.msk [vmem:[%s199 + $0xc0] sm:$0xff] %vm673, %v665
      %699 = vst.msk [vmem:[%s199 + $0xc8] sm:$0xff] %vm673, %v666
      %700 = vst.msk [vmem:[%s199 + $0xd0] sm:$0xff] %vm673, %v667
      %701 = vst.msk [vmem:[%s199 + $0xd8] sm:$0xff] %vm673, %v668
      %702 = vst.msk [vmem:[%s199 + $0xe0] sm:$0xff] %vm673, %v669
      %703 = vst.msk [vmem:[%s199 + $0xe8] sm:$0xff] %vm673, %v670
      %704 = vst.msk [vmem:[%s199 + $0xf0] sm:$0xff] %vm673, %v671
      %705 = vst.msk [vmem:[%s199 + $0xf8] sm:$0xff] %vm673, %v672
      %s706 = smul.u32 32, %s15
      %p707 = scmp.lt.s32.totalorder %s706, 63
      %s708 = scalar_select %p707, %s706, 63
      %s709 = smul.addr %s708, 8
      %s710 = scalar_lea.vmem %s4, %s709
      // Predicated region
      $region37: #{tpu_custom_call.1} parent=35 // pred_check
        %p711 = pneg %p122
      $region38: #{tpu_custom_call.1} parent=35 // pred_check_branch
        %713 = sbr.rel (%p711) target = $region40
      $region39: #{tpu_custom_call.1} parent=35 // pred_region
        %s714 = smul.u32 32, %s15
      $region40: #{tpu_custom_call.1} parent=35 // pred_fallthru
        _
    $region36: #{tpu_custom_call.1} parent=5 // pred_fallthru
      _
    %p715 = scmp.le.s32.totalorder 2, %s10
    // Predicated region
    $region41: #{tpu_custom_call.1} parent=5 // pred_check
      %p716 = pneg %p715
    $region42: #{tpu_custom_call.1} parent=5 // pred_check_branch
      %718 = sbr.rel (%p716) target = $region44
    $region43: #{tpu_custom_call.1} parent=5 // pred_region
      %s719 = ssub.s32 %s10, 2
      // Predicated region
      $region45: #{tpu_custom_call.1} parent=43 // pred_check
        %p720 = pneg %p128
      $region46: #{tpu_custom_call.1} parent=43 // pred_check_branch
        %722 = sbr.rel (%p720) target = $region48
      $region47: #{tpu_custom_call.1} parent=43 // pred_region
        %s723 = smul.u32 32, %s16
        %p724 = scmp.lt.s32.totalorder %s723, 63
        %s725 = scalar_select %p724, %s723, 63
        %s726 = smul.addr %s725, 8
        %s727 = scalar_lea.vmem %s4, %s726
      $region48: #{tpu_custom_call.1} parent=43 // pred_fallthru
        _
    $region44: #{tpu_custom_call.1} parent=5 // pred_fallthru
      _
  $region6: #{tpu_custom_call.1} parent=0 // loop_footer
    %s14 = sadd.s32 1, %s10
  $region7: #{tpu_custom_call.1} parent=0 // loop_footer_branch
    %9 = sbr.rel target = $region3
  $region8: #{tpu_custom_call.1} parent=0 // loop_exit
    _

</llo_original>
